<compile_context>
chip_gen: v7x
topology: tpu7x:2x2x1
jax: 0.10.0
libtpu: 0.0.40
codegen_flags: <defaults>
</compile_context>

<pallas_src>
import jax
import jax.numpy as jnp
from jax.experimental import pallas as pl
from jax.experimental.pallas import tpu as pltpu

LANE = 128      # lane width == MXU tile width
SUBLANE = 8     # sublane height


def _round_up(n, m):
    return ((n + m - 1) // m) * m


def _pad2d(a, rows, cols):
    return jnp.pad(a, ((0, rows - a.shape[0]), (0, cols - a.shape[1])))


def _pick_seq_chunk(S):
    # Prefer chunks that are multiples of 16 (bf16 sublane packing) so the
    # per-chunk reshape is layout-free; fall back to whole-S for small/odd S.
    for c in (32, 16, 8):
        if S % c == 0:
            return min(c, S)
    return S


# --------------------------------------------------------------------------- #
# Kernel factory: one batch tile, all modalities fused, averaged prediction
# --------------------------------------------------------------------------- #
def _make_kernel(s_chunk_rr, s_chunk_dn, bf16_tanh):
    f32 = jnp.float32

    def text_feats(notes_ref, w_ref, b_ref, s_chunk):
        tb, S, H = notes_ref.shape
        fp = w_ref.shape[-1]
        w = w_ref[...]                               # (H, FP) bf16, VMEM-resident
        b = b_ref[...]                               # (1, FP) f32

        def chunk_sum(chunk):                        # chunk: (TB, sc, H) bf16
            tok = jnp.dot(chunk.reshape(tb * s_chunk, H), w,
                          preferred_element_type=f32) + b      # (TB*sc, FP) f32
            if bf16_tanh:                            # bf16 EUP path (v6e/v7x)
                act = jnp.tanh(tok.astype(jnp.bfloat16)).astype(f32)
            else:                                    # v5e: f32 elementwise only
                act = jnp.tanh(tok)
            return jnp.sum(act.reshape(tb, s_chunk, fp), axis=1)   # (TB, FP)

        n_chunks = S // s_chunk
        if n_chunks == 1:
            acc = chunk_sum(notes_ref[...])
        else:
            def body(c, a):
                start = pl.multiple_of(c * s_chunk, s_chunk)
                return a + chunk_sum(notes_ref[:, pl.ds(start, s_chunk), :])
            acc = jax.lax.fori_loop(0, n_chunks, body,
                                    jnp.zeros((tb, fp), f32),
                                    unroll=(n_chunks <= 8))
        return acc * (1.0 / S)                       # mean over tokens

    def kernel(rr_ref, dn_ref, ehr_ref, lens_ref, inv_len_ref,
               w_rr_ref, b_rr_ref, w_dn_ref, b_dn_ref, w_ehr_ref, b_ehr_ref,
               wc_ref, bc_ref, out_ref):
        # Text branches (text_model stand-in + .mean(1) pooling)
        rr_feats = text_feats(rr_ref, w_rr_ref, b_rr_ref, s_chunk_rr)
        dn_feats = text_feats(dn_ref, w_dn_ref, b_dn_ref, s_chunk_dn)

        # EHR branch: masked mean over valid timesteps + Linear + tanh
        x = ehr_ref[...].astype(f32)                 # (TB, T, He)
        tb, T, _ = x.shape
        lens = lens_ref[...]                         # (TB, 1) int32
        t_idx = jax.lax.broadcasted_iota(jnp.int32, (tb, T), 1)
        mask = (t_idx < lens).astype(f32)            # (TB, T)
        pooled = jnp.sum(x * mask[:, :, None], axis=1) * inv_len_ref[...]
        w_e = w_ehr_ref[...]
        ehr_feats = jnp.tanh(jnp.dot(pooled.astype(w_e.dtype), w_e,
                                     preferred_element_type=f32) + b_ehr_ref[...])

        # Fused late-fusion classifier: one (TB, FPtot) x (FPtot, CP) matmul.
        # The K accumulation yields rr_pred + dn_pred + ehr_pred directly.
        feats = jnp.concatenate([rr_feats, dn_feats, ehr_feats], axis=1)
        wc = wc_ref[...]                             # (FPtot, CP) bf16
        pred_sum = jnp.dot(feats.astype(wc.dtype), wc,
                           preferred_element_type=f32) + bc_ref[...]
        out_ref[...] = pred_sum * (1.0 / 3.0)        # lane-dense f32 store

    return kernel


# --------------------------------------------------------------------------- #
# Wrapper mirroring LateFusion.forward(x=x, seq_lengths=seq_lengths, rr=rr, dn=dn)
# --------------------------------------------------------------------------- #
def late_fusion(rr, dn, x, seq_lengths, params, num_classes):
    B, S_rr, H_rr = rr.shape
    _, S_dn, H_dn = dn.shape
    _, T_e, H_e = x.shape

    C = num_classes
    CP = _round_up(C, LANE)
    FP_rr = _round_up(params['w_rr'].shape[1], LANE)
    FP_dn = _round_up(params['w_dn'].shape[1], LANE)
    FP_e = _round_up(params['w_ehr'].shape[1], LANE)
    FP_tot = FP_rr + FP_dn + FP_e

    # --- batch tile: VMEM-budgeted (no 128 cap); >= 2 grid steps when possible
    # so v7x's two TensorCores both get work via the ("parallel",) axis.
    per_row_act_bytes = 2 * (S_rr * H_rr + S_dn * H_dn + T_e * H_e)   # bf16
    tb_fit = max(SUBLANE,
                 ((16 << 20) // per_row_act_bytes) // SUBLANE * SUBLANE)
    TB = min(512, tb_fit)
    B_pad_min = _round_up(B, SUBLANE)
    if B_pad_min <= TB:
        if B_pad_min >= 2 * SUBLANE:
            TB = _round_up(-(-B_pad_min // 2), SUBLANE)   # split into 2 steps
        else:
            TB = B_pad_min                                # tiny batch: 1 step
    B_pad = _round_up(B, TB)
    nb = B_pad // TB

    def pad_batch(a):
        return jnp.pad(a, ((0, B_pad - a.shape[0]),) + ((0, 0),) * (a.ndim - 1))

    rr_p = pad_batch(rr)
    dn_p = pad_batch(dn)
    x_p = pad_batch(x)
    lens = seq_lengths.astype(jnp.int32).reshape(B, 1)
    lens_p = jnp.pad(lens, ((0, B_pad - B), (0, 0)), constant_values=1)
    inv_len_p = 1.0 / lens_p.astype(jnp.float32)      # precomputed reciprocal

    # --- weights: zero-pad feature/class dims to 128-lane tiles (exact zeros:
    # tanh(0)=0, zero classifier rows/cols contribute nothing).  Classifiers
    # are row-stacked and their biases pre-summed for the fused matmul.
    w_rr = _pad2d(params['w_rr'], H_rr, FP_rr)
    b_rr = _pad2d(params['b_rr'], 1, FP_rr)
    w_dn = _pad2d(params['w_dn'], H_dn, FP_dn)
    b_dn = _pad2d(params['b_dn'], 1, FP_dn)
    w_e = _pad2d(params['w_ehr'], H_e, FP_e)
    b_e = _pad2d(params['b_ehr'], 1, FP_e)
    wc_all = jnp.concatenate([_pad2d(params['wc_rr'], FP_rr, CP),
                              _pad2d(params['wc_dn'], FP_dn, CP),
                              _pad2d(params['wc_ehr'], FP_e, CP)], axis=0)
    bc_all = (_pad2d(params['bc_rr'], 1, CP)
              + _pad2d(params['bc_dn'], 1, CP)
              + _pad2d(params['bc_ehr'], 1, CP)).astype(jnp.float32)

    weights = (w_rr, b_rr, w_dn, b_dn, w_e, b_e, wc_all, bc_all)
    inputs = (rr_p, dn_p, x_p, lens_p, inv_len_p) + weights

    # --- generation-aware knobs
    kind = jax.devices()[0].device_kind.lower()
    is_v7 = 'v7' in kind
    bf16_tanh = ('v6' in kind) or is_v7               # v5e has no bf16 EUP/VPU

    act_bytes = TB * per_row_act_bytes
    weight_bytes = sum(int(w.size) * w.dtype.itemsize for w in weights)
    out_bytes = TB * CP * 4
    interm_bytes = 8 * TB * (FP_tot + T_e * H_e) * 4  # f32 intermediates headroom
    est_vmem = 2 * (act_bytes + out_bytes) + 2 * weight_bytes + interm_bytes
    vmem_cap = (56 << 20) if is_v7 else (100 << 20)   # v7x VMEM is 64 MiB physical
    vmem_limit = int(min(vmem_cap, max(32 << 20, est_vmem)))

    # Advisory cost estimate (bandwidth-bound, flop-light kernel).
    bytes_accessed = (sum(int(a.size) * a.dtype.itemsize for a in inputs)
                      + B_pad * CP * 4)
    flops = (2 * B_pad * (S_rr * H_rr * FP_rr + S_dn * H_dn * FP_dn
                          + H_e * FP_e + FP_tot * CP)
             + 3 * B_pad * T_e * H_e)                 # EHR masked-mean pooling
    transcendentals = B_pad * (S_rr * FP_rr + S_dn * FP_dn + FP_e)

    kernel = _make_kernel(_pick_seq_chunk(S_rr), _pick_seq_chunk(S_dn), bf16_tanh)
    weight_specs = [pl.BlockSpec(w.shape, lambda i: (0, 0)) for w in weights]

    out = pl.pallas_call(
        kernel,
        out_shape=jax.ShapeDtypeStruct((B_pad, CP), jnp.float32),
        grid=(nb,),
        in_specs=[
            pl.BlockSpec((TB, S_rr, H_rr), lambda i: (i, 0, 0)),   # rr notes
            pl.BlockSpec((TB, S_dn, H_dn), lambda i: (i, 0, 0)),   # dn notes
            pl.BlockSpec((TB, T_e, H_e), lambda i: (i, 0, 0)),     # ehr series
            pl.BlockSpec((TB, 1), lambda i: (i, 0)),               # seq_lengths
            pl.BlockSpec((TB, 1), lambda i: (i, 0)),               # 1/seq_lengths
        ] + weight_specs,
        out_specs=pl.BlockSpec((TB, CP), lambda i: (i, 0)),        # lane-dense
        compiler_params=pltpu.CompilerParams(
            dimension_semantics=("parallel",),
            vmem_limit_bytes=vmem_limit),
        cost_estimate=pl.CostEstimate(
            flops=int(flops),
            transcendentals=int(transcendentals),
            bytes_accessed=int(bytes_accessed)),
    )(*inputs)

    combined = out[:B, :C]
    return {'late': combined, 'unified': combined}


# --------------------------------------------------------------------------- #
# Pure-JAX reference (mirrors the stand-in math exactly)
# --------------------------------------------------------------------------- #
def reference_forward(rr, dn, x, seq_lengths, p):
    f32 = jnp.float32

    def text_branch(notes, w, b, wc, bc):
        B_, S_, H_ = notes.shape
        tok = jnp.dot(notes.reshape(B_ * S_, H_), w,
                      preferred_element_type=f32) + b
        feats = jnp.mean(jnp.tanh(tok).reshape(B_, S_, -1), axis=1)
        return jnp.dot(feats.astype(wc.dtype), wc,
                       preferred_element_type=f32) + bc

    rr_pred = text_branch(rr, p['w_rr'], p['b_rr'], p['wc_rr'], p['bc_rr'])
    dn_pred = text_branch(dn, p['w_dn'], p['b_dn'], p['wc_dn'], p['bc_dn'])

    T = x.shape[1]
    lens = seq_lengths.reshape(-1, 1)
    mask = (jnp.arange(T)[None, :] < lens).astype(f32)
    pooled = jnp.sum(x.astype(f32) * mask[:, :, None], axis=1) / lens.astype(f32)
    ehr_feats = jnp.tanh(jnp.dot(pooled.astype(p['w_ehr'].dtype), p['w_ehr'],
                                 preferred_element_type=f32) + p['b_ehr'])
    ehr_pred = jnp.dot(ehr_feats.astype(p['wc_ehr'].dtype), p['wc_ehr'],
                       preferred_element_type=f32) + p['bc_ehr']

    return (rr_pred + dn_pred + ehr_pred) / 3.0


if __name__ == "__main__":
    # Small, forward-consistent shapes
    B = 2
    S_RR, H_RR, F_RR = 8, 32, 32      # RR notes: seq, hidden, text_model.feats_dim_rr
    S_DN, H_DN, F_DN = 16, 32, 48     # DN notes: seq, hidden, text_model.feats_dim_dn
    T_E, H_E, F_E = 24, 16, 64        # EHR time series, ehr_model.feats_dim
    C = 2                             # args.num_classes

    key = jax.random.PRNGKey(0)
    ks = jax.random.split(key, 16)

    # Inputs stay in bf16 (native dtype fed straight to the MXU).
    rr = jax.random.normal(ks[0], (B, S_RR, H_RR), jnp.float32).astype(jnp.bfloat16)
    dn = jax.random.normal(ks[1], (B, S_DN, H_DN), jnp.float32).astype(jnp.bfloat16)
    x = jax.random.normal(ks[2], (B, T_E, H_E), jnp.float32).astype(jnp.bfloat16)
    seq_lengths = jnp.array([T_E, 13], dtype=jnp.int32)

    def lin(kw, kb, fan_in, fan_out):
        w = (jax.random.normal(kw, (fan_in, fan_out), jnp.float32) * 0.05).astype(jnp.bfloat16)
        b = jax.random.normal(kb, (1, fan_out), jnp.float32) * 0.01   # f32 bias
        return w, b

    params = {}
    params['w_rr'], params['b_rr'] = lin(ks[3], ks[4], H_RR, F_RR)
    params['wc_rr'], params['bc_rr'] = lin(ks[5], ks[6], F_RR, C)
    params['w_dn'], params['b_dn'] = lin(ks[7], ks[8], H_DN, F_DN)
    params['wc_dn'], params['bc_dn'] = lin(ks[9], ks[10], F_DN, C)
    params['w_ehr'], params['b_ehr'] = lin(ks[11], ks[12], H_E, F_E)
    params['wc_ehr'], params['bc_ehr'] = lin(ks[13], ks[14], F_E, C)

    out = late_fusion(rr, dn, x, seq_lengths, params, num_classes=C)
    late = jax.block_until_ready(out['late'])
    assert late.shape == (B, C), late.shape

    ref = reference_forward(rr, dn, x, seq_lengths, params)
    # 5e-3 tolerance covers the bf16-tanh fast path on v6e/v7x.
    assert jnp.allclose(late, ref, atol=5e-3, rtol=5e-3), (late, ref)

    print("KERNEL_OK")
</pallas_src>

<mosaic_0001>
module attributes {stable_mosaic.version = 11 : i64} {
  func.func @kernel(%arg0: i32, %arg1: memref<8x8x32xbf16, #tpu.memory_space<vmem>>, %arg2: memref<8x16x32xbf16, #tpu.memory_space<vmem>>, %arg3: memref<8x24x16xbf16, #tpu.memory_space<vmem>>, %arg4: memref<8x1xi32, #tpu.memory_space<vmem>>, %arg5: memref<8x1xf32, #tpu.memory_space<vmem>>, %arg6: memref<32x128xbf16, #tpu.memory_space<vmem>>, %arg7: memref<1x128xf32, #tpu.memory_space<vmem>>, %arg8: memref<32x128xbf16, #tpu.memory_space<vmem>>, %arg9: memref<1x128xf32, #tpu.memory_space<vmem>>, %arg10: memref<16x128xbf16, #tpu.memory_space<vmem>>, %arg11: memref<1x128xf32, #tpu.memory_space<vmem>>, %arg12: memref<384x128xbf16, #tpu.memory_space<vmem>>, %arg13: memref<1x128xf32, #tpu.memory_space<vmem>>, %arg14: memref<8x128xf32, #tpu.memory_space<vmem>>) attributes {dimension_semantics = [#tpu.dimension_semantics<parallel>], iteration_bounds = array<i64: 1>, scalar_prefetch = 0 : i64, scratch_operands = 0 : i64, tpu.core_type = #tpu.core_type<tc>, window_params = [{transform_indices = @transform_0, window_bounds = array<i64: 8, 8, 32>}, {transform_indices = @transform_1, window_bounds = array<i64: 8, 16, 32>}, {transform_indices = @transform_2, window_bounds = array<i64: 8, 24, 16>}, {transform_indices = @transform_3, window_bounds = array<i64: 8, 1>}, {transform_indices = @transform_4, window_bounds = array<i64: 8, 1>}, {pipeline_mode = #tpu.pipeline_mode<synchronous>, transform_indices = @transform_5, window_bounds = array<i64: 32, 128>}, {pipeline_mode = #tpu.pipeline_mode<synchronous>, transform_indices = @transform_6, window_bounds = array<i64: 1, 128>}, {pipeline_mode = #tpu.pipeline_mode<synchronous>, transform_indices = @transform_7, window_bounds = array<i64: 32, 128>}, {pipeline_mode = #tpu.pipeline_mode<synchronous>, transform_indices = @transform_8, window_bounds = array<i64: 1, 128>}, {pipeline_mode = #tpu.pipeline_mode<synchronous>, transform_indices = @transform_9, window_bounds = array<i64: 16, 128>}, {pipeline_mode = #tpu.pipeline_mode<synchronous>, transform_indices = @transform_10, window_bounds = array<i64: 1, 128>}, {pipeline_mode = #tpu.pipeline_mode<synchronous>, transform_indices = @transform_11, window_bounds = array<i64: 384, 128>}, {pipeline_mode = #tpu.pipeline_mode<synchronous>, transform_indices = @transform_12, window_bounds = array<i64: 1, 128>}, {transform_indices = @transform_13, window_bounds = array<i64: 8, 128>}]} {
    %c0 = arith.constant 0 : index
    %c0_0 = arith.constant 0 : index
    %0 = vector.load %arg6[%c0, %c0_0] : memref<32x128xbf16, #tpu.memory_space<vmem>>, vector<32x128xbf16>
    %c0_1 = arith.constant 0 : index
    %c0_2 = arith.constant 0 : index
    %1 = vector.load %arg7[%c0_1, %c0_2] : memref<1x128xf32, #tpu.memory_space<vmem>>, vector<1x128xf32>
    %c0_3 = arith.constant 0 : index
    %c0_4 = arith.constant 0 : index
    %c0_5 = arith.constant 0 : index
    %2 = vector.load %arg1[%c0_3, %c0_4, %c0_5] : memref<8x8x32xbf16, #tpu.memory_space<vmem>>, vector<8x8x32xbf16>
    %3 = vector.shape_cast %2 : vector<8x8x32xbf16> to vector<64x32xbf16>
    %cst = arith.constant dense<0.000000e+00> : vector<64x128xf32>
    %4 = tpu.matmul %3, %0, %cst {dimension_numbers = #tpu.dot_dimension_numbers<[1], [0], [0], [1], [0, 0, 1, 1], [], []>} : vector<64x32xbf16>, vector<32x128xbf16>, vector<64x128xf32> -> vector<64x128xf32>
    %5 = vector.broadcast %1 : vector<1x128xf32> to vector<64x128xf32>
    %6 = arith.addf %4, %5 : vector<64x128xf32>
    %7 = math.tanh %6 : vector<64x128xf32>
    %8 = vector.shape_cast %7 : vector<64x128xf32> to vector<8x8x128xf32>
    %cst_6 = arith.constant dense<0.000000e+00> : vector<8x128xf32>
    %9 = vector.multi_reduction <add>, %8, %cst_6 [1] : vector<8x8x128xf32> to vector<8x128xf32>
    %cst_7 = arith.constant 1.250000e-01 : f32
    %10 = vector.broadcast %cst_7 : f32 to vector<8x128xf32>
    %11 = arith.mulf %9, %10 : vector<8x128xf32>
    %c0_8 = arith.constant 0 : index
    %c0_9 = arith.constant 0 : index
    %12 = vector.load %arg8[%c0_8, %c0_9] : memref<32x128xbf16, #tpu.memory_space<vmem>>, vector<32x128xbf16>
    %c0_10 = arith.constant 0 : index
    %c0_11 = arith.constant 0 : index
    %13 = vector.load %arg9[%c0_10, %c0_11] : memref<1x128xf32, #tpu.memory_space<vmem>>, vector<1x128xf32>
    %c0_12 = arith.constant 0 : index
    %c0_13 = arith.constant 0 : index
    %c0_14 = arith.constant 0 : index
    %14 = vector.load %arg2[%c0_12, %c0_13, %c0_14] : memref<8x16x32xbf16, #tpu.memory_space<vmem>>, vector<8x16x32xbf16>
    %15 = vector.shape_cast %14 : vector<8x16x32xbf16> to vector<128x32xbf16>
    %cst_15 = arith.constant dense<0.000000e+00> : vector<128x128xf32>
    %16 = tpu.matmul %15, %12, %cst_15 {dimension_numbers = #tpu.dot_dimension_numbers<[1], [0], [0], [1], [0, 0, 1, 1], [], []>} : vector<128x32xbf16>, vector<32x128xbf16>, vector<128x128xf32> -> vector<128x128xf32>
    %17 = vector.broadcast %13 : vector<1x128xf32> to vector<128x128xf32>
    %18 = arith.addf %16, %17 : vector<128x128xf32>
    %19 = math.tanh %18 : vector<128x128xf32>
    %20 = vector.shape_cast %19 : vector<128x128xf32> to vector<8x16x128xf32>
    %cst_16 = arith.constant dense<0.000000e+00> : vector<8x128xf32>
    %21 = vector.multi_reduction <add>, %20, %cst_16 [1] : vector<8x16x128xf32> to vector<8x128xf32>
    %cst_17 = arith.constant 6.250000e-02 : f32
    %22 = vector.broadcast %cst_17 : f32 to vector<8x128xf32>
    %23 = arith.mulf %21, %22 : vector<8x128xf32>
    %c0_18 = arith.constant 0 : index
    %c0_19 = arith.constant 0 : index
    %c0_20 = arith.constant 0 : index
    %24 = vector.load %arg3[%c0_18, %c0_19, %c0_20] : memref<8x24x16xbf16, #tpu.memory_space<vmem>>, vector<8x24x16xbf16>
    %25 = arith.extf %24 : vector<8x24x16xbf16> to vector<8x24x16xf32>
    %c0_21 = arith.constant 0 : index
    %c0_22 = arith.constant 0 : index
    %26 = vector.load %arg4[%c0_21, %c0_22] : memref<8x1xi32, #tpu.memory_space<vmem>>, vector<8x1xi32>
    %27 = tpu.iota {dimensions = array<i32: 1>} : vector<8x24xi32>
    %28 = vector.broadcast %26 : vector<8x1xi32> to vector<8x24xi32>
    %29 = arith.cmpi slt, %27, %28 : vector<8x24xi32>
    %30 = arith.extui %29 : vector<8x24xi1> to vector<8x24xi32>
    %31 = arith.sitofp %30 : vector<8x24xi32> to vector<8x24xf32>
    %32 = vector.shape_cast %31 : vector<8x24xf32> to vector<8x24x1xf32>
    %33 = vector.broadcast %32 : vector<8x24x1xf32> to vector<8x24x16xf32>
    %34 = arith.mulf %25, %33 : vector<8x24x16xf32>
    %cst_23 = arith.constant dense<0.000000e+00> : vector<8x16xf32>
    %35 = vector.multi_reduction <add>, %34, %cst_23 [1] : vector<8x24x16xf32> to vector<8x16xf32>
    %c0_24 = arith.constant 0 : index
    %c0_25 = arith.constant 0 : index
    %36 = vector.load %arg5[%c0_24, %c0_25] : memref<8x1xf32, #tpu.memory_space<vmem>>, vector<8x1xf32>
    %37 = vector.broadcast %36 : vector<8x1xf32> to vector<8x16xf32>
    %38 = arith.mulf %35, %37 : vector<8x16xf32>
    %c0_26 = arith.constant 0 : index
    %c0_27 = arith.constant 0 : index
    %39 = vector.load %arg10[%c0_26, %c0_27] : memref<16x128xbf16, #tpu.memory_space<vmem>>, vector<16x128xbf16>
    %40 = arith.truncf %38 : vector<8x16xf32> to vector<8x16xbf16>
    %cst_28 = arith.constant dense<0.000000e+00> : vector<8x128xf32>
    %41 = tpu.matmul %40, %39, %cst_28 {dimension_numbers = #tpu.dot_dimension_numbers<[1], [0], [0], [1], [0, 0, 1, 1], [], []>} : vector<8x16xbf16>, vector<16x128xbf16>, vector<8x128xf32> -> vector<8x128xf32>
    %c0_29 = arith.constant 0 : index
    %c0_30 = arith.constant 0 : index
    %42 = vector.load %arg11[%c0_29, %c0_30] : memref<1x128xf32, #tpu.memory_space<vmem>>, vector<1x128xf32>
    %43 = vector.broadcast %42 : vector<1x128xf32> to vector<8x128xf32>
    %44 = arith.addf %41, %43 : vector<8x128xf32>
    %45 = math.tanh %44 : vector<8x128xf32>
    %46 = tpu.concatenate %11, %23, %45 in 1 : vector<8x128xf32>, vector<8x128xf32>, vector<8x128xf32> -> vector<8x384xf32>
    %c0_31 = arith.constant 0 : index
    %c0_32 = arith.constant 0 : index
    %47 = vector.load %arg12[%c0_31, %c0_32] : memref<384x128xbf16, #tpu.memory_space<vmem>>, vector<384x128xbf16>
    %48 = arith.truncf %46 : vector<8x384xf32> to vector<8x384xbf16>
    %cst_33 = arith.constant dense<0.000000e+00> : vector<8x128xf32>
    %49 = tpu.matmul %48, %47, %cst_33 {dimension_numbers = #tpu.dot_dimension_numbers<[1], [0], [0], [1], [0, 0, 1, 1], [], []>} : vector<8x384xbf16>, vector<384x128xbf16>, vector<8x128xf32> -> vector<8x128xf32>
    %c0_34 = arith.constant 0 : index
    %c0_35 = arith.constant 0 : index
    %50 = vector.load %arg13[%c0_34, %c0_35] : memref<1x128xf32, #tpu.memory_space<vmem>>, vector<1x128xf32>
    %51 = vector.broadcast %50 : vector<1x128xf32> to vector<8x128xf32>
    %52 = arith.addf %49, %51 : vector<8x128xf32>
    %cst_36 = arith.constant 0.333333343 : f32
    %53 = vector.broadcast %cst_36 : f32 to vector<8x128xf32>
    %54 = arith.mulf %52, %53 : vector<8x128xf32>
    %c0_37 = arith.constant 0 : index
    %c0_38 = arith.constant 0 : index
    %55 = vector.load %arg14[%c0_37, %c0_38] : memref<8x128xf32, #tpu.memory_space<vmem>>, vector<8x128xf32>
    tpu.vector_store %arg14[%c0_37, %c0_38], %54 {strides = array<i32>} : memref<8x128xf32, #tpu.memory_space<vmem>>, vector<8x128xf32>,
    return
  }
  func.func @transform_0(%arg0: i32) -> (i32, i32, i32) {
    %c0_i32 = arith.constant 0 : i32
    %c0_i32_0 = arith.constant 0 : i32
    %c0_i32_1 = arith.constant 0 : i32
    return %arg0, %c0_i32, %c0_i32_0 : i32, i32, i32
  }
  func.func @transform_1(%arg0: i32) -> (i32, i32, i32) {
    %c0_i32 = arith.constant 0 : i32
    %c0_i32_0 = arith.constant 0 : i32
    %c0_i32_1 = arith.constant 0 : i32
    return %arg0, %c0_i32, %c0_i32_0 : i32, i32, i32
  }
  func.func @transform_2(%arg0: i32) -> (i32, i32, i32) {
    %c0_i32 = arith.constant 0 : i32
    %c0_i32_0 = arith.constant 0 : i32
    %c0_i32_1 = arith.constant 0 : i32
    return %arg0, %c0_i32, %c0_i32_0 : i32, i32, i32
  }
  func.func @transform_3(%arg0: i32) -> (i32, i32) {
    %c0_i32 = arith.constant 0 : i32
    %c0_i32_0 = arith.constant 0 : i32
    return %arg0, %c0_i32 : i32, i32
  }
  func.func @transform_4(%arg0: i32) -> (i32, i32) {
    %c0_i32 = arith.constant 0 : i32
    %c0_i32_0 = arith.constant 0 : i32
    return %arg0, %c0_i32 : i32, i32
  }
  func.func @transform_5(%arg0: i32) -> (i32, i32) {
    %c0_i32 = arith.constant 0 : i32
    %c0_i32_0 = arith.constant 0 : i32
    %c0_i32_1 = arith.constant 0 : i32
    return %c0_i32, %c0_i32_0 : i32, i32
  }
  func.func @transform_6(%arg0: i32) -> (i32, i32) {
    %c0_i32 = arith.constant 0 : i32
    %c0_i32_0 = arith.constant 0 : i32
    %c0_i32_1 = arith.constant 0 : i32
    return %c0_i32, %c0_i32_0 : i32, i32
  }
  func.func @transform_7(%arg0: i32) -> (i32, i32) {
    %c0_i32 = arith.constant 0 : i32
    %c0_i32_0 = arith.constant 0 : i32
    %c0_i32_1 = arith.constant 0 : i32
    return %c0_i32, %c0_i32_0 : i32, i32
  }
  func.func @transform_8(%arg0: i32) -> (i32, i32) {
    %c0_i32 = arith.constant 0 : i32
    %c0_i32_0 = arith.constant 0 : i32
    %c0_i32_1 = arith.constant 0 : i32
    return %c0_i32, %c0_i32_0 : i32, i32
  }
  func.func @transform_9(%arg0: i32) -> (i32, i32) {
    %c0_i32 = arith.constant 0 : i32
    %c0_i32_0 = arith.constant 0 : i32
    %c0_i32_1 = arith.constant 0 : i32
    return %c0_i32, %c0_i32_0 : i32, i32
  }
  func.func @transform_10(%arg0: i32) -> (i32, i32) {
    %c0_i32 = arith.constant 0 : i32
    %c0_i32_0 = arith.constant 0 : i32
    %c0_i32_1 = arith.constant 0 : i32
    return %c0_i32, %c0_i32_0 : i32, i32
  }
  func.func @transform_11(%arg0: i32) -> (i32, i32) {
    %c0_i32 = arith.constant 0 : i32
    %c0_i32_0 = arith.constant 0 : i32
    %c0_i32_1 = arith.constant 0 : i32
    return %c0_i32, %c0_i32_0 : i32, i32
  }
  func.func @transform_12(%arg0: i32) -> (i32, i32) {
    %c0_i32 = arith.constant 0 : i32
    %c0_i32_0 = arith.constant 0 : i32
    %c0_i32_1 = arith.constant 0 : i32
    return %c0_i32, %c0_i32_0 : i32, i32
  }
  func.func @transform_13(%arg0: i32) -> (i32, i32) {
    %c0_i32 = arith.constant 0 : i32
    %c0_i32_0 = arith.constant 0 : i32
    return %arg0, %c0_i32 : i32, i32
  }
}

</mosaic_0001>

<llo_original>
// kernel: tpu_custom_call.1
$region0: #{tpu_custom_call.1}
  #allocation0 [shape = 'u32[]', space=smem, size = 0x4, offset = 0x4, fixed_abs, tag = 'smem constant byte address 0x4 - core index']
  #allocation1 [shape = 'u32[144,128]{1,0:T(1,128)}', space=vmem, size = 0x12000, scoped, tag = 'internal scratch']
  %s0 = inlined_call_operand.hbm [shape: bf16[8,8,32], index: 0, kind: input, shape index: {}]
  %s1 = inlined_call_operand.hbm [shape: bf16[8,16,32], index: 1, kind: input, shape index: {}]
  %s2 = inlined_call_operand.vmem [shape: bf16[8,24,16], index: 2, kind: input, shape index: {}]
  %s3 = inlined_call_operand.vmem [shape: s32[8,1], index: 3, kind: input, shape index: {}]
  %s4 = inlined_call_operand.vmem [shape: f32[8,1], index: 4, kind: input, shape index: {}]
  %s5 = inlined_call_operand.vmem [shape: bf16[32,128], index: 5, kind: input, shape index: {}]
  %s6 = inlined_call_operand.vmem [shape: f32[1,128], index: 6, kind: input, shape index: {}]
  %s7 = inlined_call_operand.hbm [shape: bf16[32,128], index: 7, kind: input, shape index: {}]
  %s8 = inlined_call_operand.vmem [shape: f32[1,128], index: 8, kind: input, shape index: {}]
  %s9 = inlined_call_operand.vmem [shape: bf16[16,128], index: 9, kind: input, shape index: {}]
  %s10 = inlined_call_operand.vmem [shape: f32[1,128], index: 10, kind: input, shape index: {}]
  %s11 = inlined_call_operand.vmem [shape: bf16[384,128], index: 11, kind: input, shape index: {}]
  %s12 = inlined_call_operand.vmem [shape: f32[1,128], index: 12, kind: input, shape index: {}]
  %s13 = inlined_call_operand.hbm [shape: f32[8,128], index: 13, kind: output, shape index: {}]
  %s14 = sld [smem:[#allocation0]]
  $region74: #{tpu_custom_call.1} parent=0
    _
  %s16 = ssub.s32 1, %s14
  %s17 = scalar_select 0, %s16, %s14
  $region1: #{tpu_custom_call.1} parent=0
    #allocation2 [shape = 'u8[16384]{0}', space=vmem, size = 0x4000, scoped, tag = 'input window, operand 0, single buffered']
    #allocation3 [shape = 's32[1]{0}', space=sflag, size = 0x4, scoped, tag = 'scoped memory for tpu_custom_call.1']
    #allocation4 [shape = 's32[1]{0}', space=sflag, size = 0x4, scoped, tag = 'scoped memory for tpu_custom_call.1']
    #allocation5 [shape = 'u8[32768]{0}', space=vmem, size = 0x8000, scoped, tag = 'input window, operand 1, single buffered']
    #allocation6 [shape = 's32[1]{0}', space=sflag, size = 0x4, scoped, tag = 'scoped memory for tpu_custom_call.1']
    #allocation7 [shape = 'u8[8192]{0}', space=vmem, size = 0x2000, scoped, tag = 'input window, operand 7, single buffered']
    #allocation8 [shape = 'u8[4096]{0}', space=vmem, size = 0x1000, scoped, tag = 'output window, operand 0, single buffered']
    %18 = vsyncpa [#allocation3], 0
    %19 = vsyncpa [#allocation6], 0
    %20 = vsyncpa [#allocation4], 0
    // Predicated region
    $region2: #{tpu_custom_call.1} parent=1 // pred_check
      _
    $region3: #{tpu_custom_call.1} parent=1 // pred_check_branch
      %22 = sbr.rel (0) target = $region5
    $region4: #{tpu_custom_call.1} parent=1 // pred_region
      %s24 = ssub.s32 512, 512
      %25 = vsyncadd [#allocation3], %s24
      %s26 = sshll.u32 [#allocation2], 4
      %s27 = int_to_ptr.vmem [resolvable:$true] %s26
      %32 = dma.hbm_to_vmem [thread:$0]  %s0, 512, %s27, [#allocation3], 64, 64, 4
    $region5: #{tpu_custom_call.1} parent=1 // pred_fallthru
      _
    // Predicated region
    $region6: #{tpu_custom_call.1} parent=1 // pred_check
      _
    $region7: #{tpu_custom_call.1} parent=1 // pred_check_branch
      %34 = sbr.rel (0) target = $region9
    $region8: #{tpu_custom_call.1} parent=1 // pred_region
      %s36 = ssub.s32 1024, 1024
      %37 = vsyncadd [#allocation6], %s36
      %s38 = sshll.u32 [#allocation5], 4
      %s39 = int_to_ptr.vmem [resolvable:$true] %s38
      %44 = dma.hbm_to_vmem [thread:$0]  %s1, 1024, %s39, [#allocation6], 64, 64, 4
    $region9: #{tpu_custom_call.1} parent=1 // pred_fallthru
      _
    // Predicated region
    $region10: #{tpu_custom_call.1} parent=1 // pred_check
      _
    $region11: #{tpu_custom_call.1} parent=1 // pred_check_branch
      %46 = sbr.rel (0) target = $region13
    $region12: #{tpu_custom_call.1} parent=1 // pred_region
      _
    $region13: #{tpu_custom_call.1} parent=1 // pred_fallthru
      _
    // Predicated region
    $region14: #{tpu_custom_call.1} parent=1 // pred_check
      _
    $region15: #{tpu_custom_call.1} parent=1 // pred_check_branch
      %48 = sbr.rel (0) target = $region17
    $region16: #{tpu_custom_call.1} parent=1 // pred_region
      _
    $region17: #{tpu_custom_call.1} parent=1 // pred_fallthru
      _
    // Predicated region
    $region18: #{tpu_custom_call.1} parent=1 // pred_check
      _
    $region19: #{tpu_custom_call.1} parent=1 // pred_check_branch
      %50 = sbr.rel (0) target = $region21
    $region20: #{tpu_custom_call.1} parent=1 // pred_region
      _
    $region21: #{tpu_custom_call.1} parent=1 // pred_fallthru
      _
    // Predicated region
    $region22: #{tpu_custom_call.1} parent=1 // pred_check
      _
    $region23: #{tpu_custom_call.1} parent=1 // pred_check_branch
      %52 = sbr.rel (0) target = $region25
    $region24: #{tpu_custom_call.1} parent=1 // pred_region
      _
    $region25: #{tpu_custom_call.1} parent=1 // pred_fallthru
      _
    // Predicated region
    $region26: #{tpu_custom_call.1} parent=1 // pred_check
      _
    $region27: #{tpu_custom_call.1} parent=1 // pred_check_branch
      %54 = sbr.rel (0) target = $region29
    $region28: #{tpu_custom_call.1} parent=1 // pred_region
      _
    $region29: #{tpu_custom_call.1} parent=1 // pred_fallthru
      _
    // Predicated region
    $region30: #{tpu_custom_call.1} parent=1 // pred_check
      _
    $region31: #{tpu_custom_call.1} parent=1 // pred_check_branch
      %56 = sbr.rel (0) target = $region33
    $region32: #{tpu_custom_call.1} parent=1 // pred_region
      %s58 = ssub.s32 256, 256
      %59 = vsyncadd [#allocation6], %s58
      %s60 = sshll.u32 [#allocation7], 4
      %s61 = int_to_ptr.vmem [resolvable:$true] %s60
      %66 = dma.hbm_to_vmem [thread:$0]  %s7, 256, %s61, [#allocation6], 64, 64, 4
    $region33: #{tpu_custom_call.1} parent=1 // pred_fallthru
      _
    // Predicated region
    $region34: #{tpu_custom_call.1} parent=1 // pred_check
      _
    $region35: #{tpu_custom_call.1} parent=1 // pred_check_branch
      %68 = sbr.rel (0) target = $region37
    $region36: #{tpu_custom_call.1} parent=1 // pred_region
      _
    $region37: #{tpu_custom_call.1} parent=1 // pred_fallthru
      _
    // Predicated region
    $region38: #{tpu_custom_call.1} parent=1 // pred_check
      _
    $region39: #{tpu_custom_call.1} parent=1 // pred_check_branch
      %70 = sbr.rel (0) target = $region41
    $region40: #{tpu_custom_call.1} parent=1 // pred_region
      _
    $region41: #{tpu_custom_call.1} parent=1 // pred_fallthru
      _
    // Predicated region
    $region42: #{tpu_custom_call.1} parent=1 // pred_check
      _
    $region43: #{tpu_custom_call.1} parent=1 // pred_check_branch
      %72 = sbr.rel (0) target = $region45
    $region44: #{tpu_custom_call.1} parent=1 // pred_region
      _
    $region45: #{tpu_custom_call.1} parent=1 // pred_fallthru
      _
    // Predicated region
    $region46: #{tpu_custom_call.1} parent=1 // pred_check
      _
    $region47: #{tpu_custom_call.1} parent=1 // pred_check_branch
      %74 = sbr.rel (0) target = $region49
    $region48: #{tpu_custom_call.1} parent=1 // pred_region
      _
    $region49: #{tpu_custom_call.1} parent=1 // pred_fallthru
      _
    // Predicated region
    $region50: #{tpu_custom_call.1} parent=1 // pred_check
      _
    $region51: #{tpu_custom_call.1} parent=1 // pred_check_branch
      %76 = sbr.rel (0) target = $region53
    $region52: #{tpu_custom_call.1} parent=1 // pred_region
      _
    $region53: #{tpu_custom_call.1} parent=1 // pred_fallthru
      _
    // Predicated region
    $region54: #{tpu_custom_call.1} parent=1 // pred_check
      _
    $region55: #{tpu_custom_call.1} parent=1 // pred_check_branch
      %78 = sbr.rel (0) target = $region57
    $region56: #{tpu_custom_call.1} parent=1 // pred_region
      %79 = dma.done [#allocation3], 512
    $region57: #{tpu_custom_call.1} parent=1 // pred_fallthru
      _
    // Predicated region
    $region58: #{tpu_custom_call.1} parent=1 // pred_check
      _
    $region59: #{tpu_custom_call.1} parent=1 // pred_check_branch
      %81 = sbr.rel (0) target = $region61
    $region60: #{tpu_custom_call.1} parent=1 // pred_region
      %82 = dma.done [#allocation6], 1024
    $region61: #{tpu_custom_call.1} parent=1 // pred_fallthru
      _
    // Predicated region
    $region62: #{tpu_custom_call.1} parent=1 // pred_check
      _
    $region63: #{tpu_custom_call.1} parent=1 // pred_check_branch
      %84 = sbr.rel (0) target = $region65
    $region64: #{tpu_custom_call.1} parent=1 // pred_region
      %85 = dma.done [#allocation6], 256
    $region65: #{tpu_custom_call.1} parent=1 // pred_fallthru
      _
    %v87 = vld [vmem:[%s5] sm:$0xf]
    %v88 = vld [vmem:[%s5 + $0x4] sm:$0xf]
    %v89 = vld [vmem:[%s5 + $0x8] sm:$0xf]
    %v90 = vld [vmem:[%s5 + $0xc] sm:$0xf]
    %v91 = vld [vmem:[%s6] sm:$0x1]
    %v92 = vld [vmem:[#allocation2] sm:$0xf]
    %v93 = vld [vmem:[#allocation2 + $0x4] sm:$0xf]
    %v94 = vld [vmem:[#allocation2 + $0x8] sm:$0xf]
    %v95 = vld [vmem:[#allocation2 + $0xc] sm:$0xf]
    %v96 = vld [vmem:[#allocation2 + $0x10] sm:$0xf]
    %v97 = vld [vmem:[#allocation2 + $0x14] sm:$0xf]
    %v98 = vld [vmem:[#allocation2 + $0x18] sm:$0xf]
    %v99 = vld [vmem:[#allocation2 + $0x1c] sm:$0xf]
    %v101 = vlaneseq
    %v102 = vshrl.u32 %v101, 7
    %v103 = vsub.s32 0, %v102
    %v104 = vrot.slane %v91, %v103
    %v114 = vunpack.c.l.b16 %v92
    %v115 = vunpack.c.l.b16 %v93
    %v116 = vunpack.c.l.b16 %v94
    %v117 = vunpack.c.l.b16 %v95
    %v118 = vunpack.c.l.b16 %v96
    %v119 = vunpack.c.l.b16 %v97
    %v120 = vunpack.c.l.b16 %v98
    %v121 = vunpack.c.l.b16 %v99
    %v122 = vpack.c.b16 %v115, %v114
    %v123 = vpack.c.b16 %v117, %v116
    %v124 = vpack.c.b16 %v119, %v118
    %v125 = vpack.c.b16 %v121, %v120
    %v130 = vunpack.c.l.b16 %v87
    %v131 = vunpack.c.l.b16 %v88
    %v132 = vunpack.c.l.b16 %v89
    %v133 = vunpack.c.l.b16 %v90
    %v134 = vpack.c.b16 %v131, %v130
    %v135 = vpack.c.b16 %v133, %v132
    %vm138 = vcmask 261120
    %v140 = vsel %vm138, %v122, 0
    %v143 = vsel %vm138, %v123, 0
    %v146 = vsel %vm138, %v124, 0
    %v149 = vsel %vm138, %v125, 0
    %151 = vmatprep.subr.bf16.mxu0 0
    %152 = vmatpush1.bf16.msra.mxu0 %v134
    %153 = vmatprep.subr.bf16.mxu0 0
    %154 = vmatpush1.bf16.msra.mxu0 %v135
    %155 = vmatprep.subr.bf16.mxu0 0
    %156 = vmatpush1.bf16.msra.mxu0 0
    %157 = vmatprep.subr.bf16.mxu0 0
    %158 = vmatpush1.bf16.msra.mxu0 0
    %159 = vmatprep.subr.bf16.mxu0 0
    %160 = vmatpush1.bf16.msra.mxu0 0
    %161 = vmatprep.subr.bf16.mxu0 0
    %162 = vmatpush1.bf16.msra.mxu0 0
    %163 = vmatprep.subr.bf16.mxu0 0
    %164 = vmatpush1.bf16.msra.mxu0 0
    %165 = vmatprep.subr.bf16.mxu0 0
    %166 = vmatpush1.bf16.msra.mxu0 0
    %167 = vmatprep.subr.bf16.mxu0 0
    %168 = vmatpush1.bf16.msra.mxu0 0
    %169 = vmatprep.subr.bf16.mxu0 0
    %170 = vmatpush1.bf16.msra.mxu0 0
    %171 = vmatprep.subr.bf16.mxu0 0
    %172 = vmatpush1.bf16.msra.mxu0 0
    %173 = vmatprep.subr.bf16.mxu0 0
    %174 = vmatpush1.bf16.msra.mxu0 0
    %175 = vmatprep.subr.bf16.mxu0 0
    %176 = vmatpush1.bf16.msra.mxu0 0
    %177 = vmatprep.subr.bf16.mxu0 0
    %178 = vmatpush1.bf16.msra.mxu0 0
    %179 = vmatprep.subr.bf16.mxu0 0
    %180 = vmatpush1.bf16.msra.mxu0 0
    %181 = vmatprep.subr.bf16.mxu0 0
    %182 = vmatpush1.bf16.msra.mxu0 0
    %183 = vmatprep.mubr.bf16.mxu0 0
    %184 = vmatmul.mubr.bf16.gmra.mrb[0].mxu0 %v140
    %v185 = vpop.f32.mrb[0].mxu0
    %v186 = vadd.f32 %v104, %v185
    %v187 = vpop.f32.mrb[0].mxu0
    %v188 = vpop.f32.mrb[0].mxu0
    %v189 = vadd.f32 %v104, %v188
    %v190 = vpop.f32.mrb[0].mxu0
    %191 = vmatprep.mubr.bf16.mxu0 0
    %192 = vmatmul.mubr.bf16.gmra.mrb[0].mxu0 %v143
    %v193 = vpop.f32.mrb[0].mxu0
    %v194 = vadd.f32 %v104, %v193
    %v195 = vpop.f32.mrb[0].mxu0
    %v196 = vpop.f32.mrb[0].mxu0
    %v197 = vadd.f32 %v104, %v196
    %v198 = vpop.f32.mrb[0].mxu0
    %199 = vmatprep.mubr.bf16.mxu0 0
    %200 = vmatmul.mubr.bf16.gmra.mrb[0].mxu0 %v146
    %v201 = vpop.f32.mrb[0].mxu0
    %v202 = vadd.f32 %v104, %v201
    %v203 = vpop.f32.mrb[0].mxu0
    %v204 = vpop.f32.mrb[0].mxu0
    %v205 = vadd.f32 %v104, %v204
    %v206 = vpop.f32.mrb[0].mxu0
    %207 = vmatprep.mubr.bf16.mxu0 0
    %208 = vmatmul.mubr.bf16.gmra.mrb[0].mxu0 %v149
    %v209 = vpop.f32.mrb[0].mxu0
    %v210 = vadd.f32 %v104, %v209
    %v211 = vpop.f32.mrb[0].mxu0
    %v212 = vpop.f32.mrb[0].mxu0
    %v213 = vadd.f32 %v104, %v212
    %v214 = vpop.f32.mrb[0].mxu0
    %215 = vdwg.mxu0
    %v216 = vtanh.pop %v186
    %v217 = vtanh.pop %v189
    %v218 = vtanh.pop %v194
    %v219 = vtanh.pop %v197
    %v220 = vtanh.pop %v202
    %v221 = vtanh.pop %v205
    %v222 = vtanh.pop %v210
    %v223 = vtanh.pop %v213
    %v224 = vrot.slane %v216, 4
    %v225 = vadd.f32 %v216, %v224
    %v226 = vrot.slane %v225, 2
    %v227 = vadd.f32 %v225, %v226
    %v228 = vrot.slane %v227, 1
    %v229 = vadd.f32 %v227, %v228
    %v230 = vrot.slane %v217, 4
    %v231 = vadd.f32 %v217, %v230
    %v232 = vrot.slane %v231, 2
    %v233 = vadd.f32 %v231, %v232
    %v234 = vrot.slane %v233, 1
    %v235 = vadd.f32 %v233, %v234
    %v236 = vrot.slane %v218, 4
    %v237 = vadd.f32 %v218, %v236
    %v238 = vrot.slane %v237, 2
    %v239 = vadd.f32 %v237, %v238
    %v240 = vrot.slane %v239, 1
    %v241 = vadd.f32 %v239, %v240
    %v242 = vrot.slane %v219, 4
    %v243 = vadd.f32 %v219, %v242
    %v244 = vrot.slane %v243, 2
    %v245 = vadd.f32 %v243, %v244
    %v246 = vrot.slane %v245, 1
    %v247 = vadd.f32 %v245, %v246
    %v248 = vrot.slane %v220, 4
    %v249 = vadd.f32 %v220, %v248
    %v250 = vrot.slane %v249, 2
    %v251 = vadd.f32 %v249, %v250
    %v252 = vrot.slane %v251, 1
    %v253 = vadd.f32 %v251, %v252
    %v254 = vrot.slane %v221, 4
    %v255 = vadd.f32 %v221, %v254
    %v256 = vrot.slane %v255, 2
    %v257 = vadd.f32 %v255, %v256
    %v258 = vrot.slane %v257, 1
    %v259 = vadd.f32 %v257, %v258
    %v260 = vrot.slane %v222, 4
    %v261 = vadd.f32 %v222, %v260
    %v262 = vrot.slane %v261, 2
    %v263 = vadd.f32 %v261, %v262
    %v264 = vrot.slane %v263, 1
    %v265 = vadd.f32 %v263, %v264
    %v266 = vrot.slane %v223, 4
    %v267 = vadd.f32 %v223, %v266
    %v268 = vrot.slane %v267, 2
    %v269 = vadd.f32 %v267, %v268
    %v270 = vrot.slane %v269, 1
    %v271 = vadd.f32 %v269, %v270
    %v272 = vmul.f32 %v229, 0.125
    %v273 = vmul.f32 %v235, 0.125
    %v274 = vmul.f32 %v241, 0.125
    %v275 = vmul.f32 %v247, 0.125
    %v276 = vmul.f32 %v253, 0.125
    %v277 = vmul.f32 %v259, 0.125
    %v278 = vmul.f32 %v265, 0.125
    %v279 = vmul.f32 %v271, 0.125
    %v280 = vld [vmem:[#allocation7] sm:$0xf]
    %v281 = vld [vmem:[#allocation7 + $0x4] sm:$0xf]
    %v282 = vld [vmem:[#allocation7 + $0x8] sm:$0xf]
    %v283 = vld [vmem:[#allocation7 + $0xc] sm:$0xf]
    %v284 = vld [vmem:[%s8] sm:$0x1]
    %v285 = vld [vmem:[#allocation5] sm:$0xf]
    %v286 = vld [vmem:[#allocation5 + $0x4] sm:$0xf]
    %v287 = vld [vmem:[#allocation5 + $0x8] sm:$0xf]
    %v288 = vld [vmem:[#allocation5 + $0xc] sm:$0xf]
    %v289 = vld [vmem:[#allocation5 + $0x10] sm:$0xf]
    %v290 = vld [vmem:[#allocation5 + $0x14] sm:$0xf]
    %v291 = vld [vmem:[#allocation5 + $0x18] sm:$0xf]
    %v292 = vld [vmem:[#allocation5 + $0x1c] sm:$0xf]
    %v293 = vld [vmem:[#allocation5 + $0x20] sm:$0xf]
    %v294 = vld [vmem:[#allocation5 + $0x24] sm:$0xf]
    %v295 = vld [vmem:[#allocation5 + $0x28] sm:$0xf]
    %v296 = vld [vmem:[#allocation5 + $0x2c] sm:$0xf]
    %v297 = vld [vmem:[#allocation5 + $0x30] sm:$0xf]
    %v298 = vld [vmem:[#allocation5 + $0x34] sm:$0xf]
    %v299 = vld [vmem:[#allocation5 + $0x38] sm:$0xf]
    %v300 = vld [vmem:[#allocation5 + $0x3c] sm:$0xf]
    %v302 = vlaneseq
    %v303 = vshrl.u32 %v302, 7
    %v304 = vsub.s32 0, %v303
    %v305 = vrot.slane %v284, %v304
    %v323 = vunpack.c.l.b16 %v285
    %v324 = vunpack.c.l.b16 %v286
    %v325 = vunpack.c.l.b16 %v287
    %v326 = vunpack.c.l.b16 %v288
    %v327 = vunpack.c.l.b16 %v289
    %v328 = vunpack.c.l.b16 %v290
    %v329 = vunpack.c.l.b16 %v291
    %v330 = vunpack.c.l.b16 %v292
    %v331 = vunpack.c.l.b16 %v293
    %v332 = vunpack.c.l.b16 %v294
    %v333 = vunpack.c.l.b16 %v295
    %v334 = vunpack.c.l.b16 %v296
    %v335 = vunpack.c.l.b16 %v297
    %v336 = vunpack.c.l.b16 %v298
    %v337 = vunpack.c.l.b16 %v299
    %v338 = vunpack.c.l.b16 %v300
    %v339 = vpack.c.b16 %v324, %v323
    %v340 = vpack.c.b16 %v326, %v325
    %v341 = vpack.c.b16 %v328, %v327
    %v342 = vpack.c.b16 %v330, %v329
    %v343 = vpack.c.b16 %v332, %v331
    %v344 = vpack.c.b16 %v334, %v333
    %v345 = vpack.c.b16 %v336, %v335
    %v346 = vpack.c.b16 %v338, %v337
    %v351 = vunpack.c.l.b16 %v280
    %v352 = vunpack.c.l.b16 %v281
    %v353 = vunpack.c.l.b16 %v282
    %v354 = vunpack.c.l.b16 %v283
    %v355 = vpack.c.b16 %v352, %v351
    %v356 = vpack.c.b16 %v354, %v353
    %v360 = vsel %vm138, %v339, 0
    %v363 = vsel %vm138, %v340, 0
    %v366 = vsel %vm138, %v341, 0
    %v369 = vsel %vm138, %v342, 0
    %v372 = vsel %vm138, %v343, 0
    %v375 = vsel %vm138, %v344, 0
    %v378 = vsel %vm138, %v345, 0
    %v381 = vsel %vm138, %v346, 0
    %383 = vmatprep.subr.bf16.mxu0 0
    %384 = vmatpush1.bf16.msra.mxu0 %v355
    %385 = vmatprep.subr.bf16.mxu0 0
    %386 = vmatpush1.bf16.msra.mxu0 %v356
    %387 = vmatprep.subr.bf16.mxu0 0
    %388 = vmatpush1.bf16.msra.mxu0 0
    %389 = vmatprep.subr.bf16.mxu0 0
    %390 = vmatpush1.bf16.msra.mxu0 0
    %391 = vmatprep.subr.bf16.mxu0 0
    %392 = vmatpush1.bf16.msra.mxu0 0
    %393 = vmatprep.subr.bf16.mxu0 0
    %394 = vmatpush1.bf16.msra.mxu0 0
    %395 = vmatprep.subr.bf16.mxu0 0
    %396 = vmatpush1.bf16.msra.mxu0 0
    %397 = vmatprep.subr.bf16.mxu0 0
    %398 = vmatpush1.bf16.msra.mxu0 0
    %399 = vmatprep.subr.bf16.mxu0 0
    %400 = vmatpush1.bf16.msra.mxu0 0
    %401 = vmatprep.subr.bf16.mxu0 0
    %402 = vmatpush1.bf16.msra.mxu0 0
    %403 = vmatprep.subr.bf16.mxu0 0
    %404 = vmatpush1.bf16.msra.mxu0 0
    %405 = vmatprep.subr.bf16.mxu0 0
    %406 = vmatpush1.bf16.msra.mxu0 0
    %407 = vmatprep.subr.bf16.mxu0 0
    %408 = vmatpush1.bf16.msra.mxu0 0
    %409 = vmatprep.subr.bf16.mxu0 0
    %410 = vmatpush1.bf16.msra.mxu0 0
    %411 = vmatprep.subr.bf16.mxu0 0
    %412 = vmatpush1.bf16.msra.mxu0 0
    %413 = vmatprep.subr.bf16.mxu0 0
    %414 = vmatpush1.bf16.msra.mxu0 0
    %415 = vmatprep.mubr.bf16.mxu0 0
    %416 = vmatmul.mubr.bf16.gmra.mrb[0].mxu0 %v360
    %v417 = vpop.f32.mrb[0].mxu0
    %v418 = vadd.f32 %v305, %v417
    %v419 = vpop.f32.mrb[0].mxu0
    %v420 = vpop.f32.mrb[0].mxu0
    %v421 = vadd.f32 %v305, %v420
    %v422 = vpop.f32.mrb[0].mxu0
    %423 = vmatprep.mubr.bf16.mxu0 0
    %424 = vmatmul.mubr.bf16.gmra.mrb[0].mxu0 %v363
    %v425 = vpop.f32.mrb[0].mxu0
    %v426 = vadd.f32 %v305, %v425
    %v427 = vpop.f32.mrb[0].mxu0
    %v428 = vpop.f32.mrb[0].mxu0
    %v429 = vadd.f32 %v305, %v428
    %v430 = vpop.f32.mrb[0].mxu0
    %431 = vmatprep.mubr.bf16.mxu0 0
    %432 = vmatmul.mubr.bf16.gmra.mrb[0].mxu0 %v366
    %v433 = vpop.f32.mrb[0].mxu0
    %v434 = vadd.f32 %v305, %v433
    %v435 = vpop.f32.mrb[0].mxu0
    %v436 = vpop.f32.mrb[0].mxu0
    %v437 = vadd.f32 %v305, %v436
    %v438 = vpop.f32.mrb[0].mxu0
    %439 = vmatprep.mubr.bf16.mxu0 0
    %440 = vmatmul.mubr.bf16.gmra.mrb[0].mxu0 %v369
    %v441 = vpop.f32.mrb[0].mxu0
    %v442 = vadd.f32 %v305, %v441
    %v443 = vpop.f32.mrb[0].mxu0
    %v444 = vpop.f32.mrb[0].mxu0
    %v445 = vadd.f32 %v305, %v444
    %v446 = vpop.f32.mrb[0].mxu0
    %447 = vmatprep.mubr.bf16.mxu0 0
    %448 = vmatmul.mubr.bf16.gmra.mrb[0].mxu0 %v372
    %v449 = vpop.f32.mrb[0].mxu0
    %v450 = vadd.f32 %v305, %v449
    %v451 = vpop.f32.mrb[0].mxu0
    %v452 = vpop.f32.mrb[0].mxu0
    %v453 = vadd.f32 %v305, %v452
    %v454 = vpop.f32.mrb[0].mxu0
    %455 = vmatprep.mubr.bf16.mxu0 0
    %456 = vmatmul.mubr.bf16.gmra.mrb[0].mxu0 %v375
    %v457 = vpop.f32.mrb[0].mxu0
    %v458 = vadd.f32 %v305, %v457
    %v459 = vpop.f32.mrb[0].mxu0
    %v460 = vpop.f32.mrb[0].mxu0
    %v461 = vadd.f32 %v305, %v460
    %v462 = vpop.f32.mrb[0].mxu0
    %463 = vmatprep.mubr.bf16.mxu0 0
    %464 = vmatmul.mubr.bf16.gmra.mrb[0].mxu0 %v378
    %v465 = vpop.f32.mrb[0].mxu0
    %v466 = vadd.f32 %v305, %v465
    %v467 = vpop.f32.mrb[0].mxu0
    %v468 = vpop.f32.mrb[0].mxu0
    %v469 = vadd.f32 %v305, %v468
    %v470 = vpop.f32.mrb[0].mxu0
    %471 = vmatprep.mubr.bf16.mxu0 0
    %472 = vmatmul.mubr.bf16.gmra.mrb[0].mxu0 %v381
    %v473 = vpop.f32.mrb[0].mxu0
    %v474 = vadd.f32 %v305, %v473
    %v475 = vpop.f32.mrb[0].mxu0
    %v476 = vpop.f32.mrb[0].mxu0
    %v477 = vadd.f32 %v305, %v476
    %v478 = vpop.f32.mrb[0].mxu0
    %479 = vdwg.mxu0
    %v480 = vtanh.pop %v418
    %v481 = vtanh.pop %v421
    %v482 = vtanh.pop %v426
    %v483 = vtanh.pop %v429
    %v484 = vtanh.pop %v434
    %v485 = vtanh.pop %v437
    %v486 = vtanh.pop %v442
    %v487 = vtanh.pop %v445
    %v488 = vtanh.pop %v450
    %v489 = vtanh.pop %v453
    %v490 = vtanh.pop %v458
    %v491 = vtanh.pop %v461
    %v492 = vtanh.pop %v466
    %v493 = vtanh.pop %v469
    %v494 = vtanh.pop %v474
    %v495 = vtanh.pop %v477
    %v496 = vadd.f32 %v480, %v481
    %v497 = vrot.slane %v496, 4
    %v498 = vadd.f32 %v496, %v497
    %v499 = vrot.slane %v498, 2
    %v500 = vadd.f32 %v498, %v499
    %v501 = vrot.slane %v500, 1
    %v502 = vadd.f32 %v500, %v501
    %v503 = vadd.f32 %v482, %v483
    %v504 = vrot.slane %v503, 4
    %v505 = vadd.f32 %v503, %v504
    %v506 = vrot.slane %v505, 2
    %v507 = vadd.f32 %v505, %v506
    %v508 = vrot.slane %v507, 1
    %v509 = vadd.f32 %v507, %v508
    %v510 = vadd.f32 %v484, %v485
    %v511 = vrot.slane %v510, 4
    %v512 = vadd.f32 %v510, %v511
    %v513 = vrot.slane %v512, 2
    %v514 = vadd.f32 %v512, %v513
    %v515 = vrot.slane %v514, 1
    %v516 = vadd.f32 %v514, %v515
    %v517 = vadd.f32 %v486, %v487
    %v518 = vrot.slane %v517, 4
    %v519 = vadd.f32 %v517, %v518
    %v520 = vrot.slane %v519, 2
    %v521 = vadd.f32 %v519, %v520
    %v522 = vrot.slane %v521, 1
    %v523 = vadd.f32 %v521, %v522
    %v524 = vadd.f32 %v488, %v489
    %v525 = vrot.slane %v524, 4
    %v526 = vadd.f32 %v524, %v525
    %v527 = vrot.slane %v526, 2
    %v528 = vadd.f32 %v526, %v527
    %v529 = vrot.slane %v528, 1
    %v530 = vadd.f32 %v528, %v529
    %v531 = vadd.f32 %v490, %v491
    %v532 = vrot.slane %v531, 4
    %v533 = vadd.f32 %v531, %v532
    %v534 = vrot.slane %v533, 2
    %v535 = vadd.f32 %v533, %v534
    %v536 = vrot.slane %v535, 1
    %v537 = vadd.f32 %v535, %v536
    %v538 = vadd.f32 %v492, %v493
    %v539 = vrot.slane %v538, 4
    %v540 = vadd.f32 %v538, %v539
    %v541 = vrot.slane %v540, 2
    %v542 = vadd.f32 %v540, %v541
    %v543 = vrot.slane %v542, 1
    %v544 = vadd.f32 %v542, %v543
    %v545 = vadd.f32 %v494, %v495
    %v546 = vrot.slane %v545, 4
    %v547 = vadd.f32 %v545, %v546
    %v548 = vrot.slane %v547, 2
    %v549 = vadd.f32 %v547, %v548
    %v550 = vrot.slane %v549, 1
    %v551 = vadd.f32 %v549, %v550
    %v552 = vmul.f32 %v502, 0.0625
    %v553 = vmul.f32 %v509, 0.0625
    %v554 = vmul.f32 %v516, 0.0625
    %v555 = vmul.f32 %v523, 0.0625
    %v556 = vmul.f32 %v530, 0.0625
    %v557 = vmul.f32 %v537, 0.0625
    %v558 = vmul.f32 %v544, 0.0625
    %v559 = vmul.f32 %v551, 0.0625
    %v560 = vld [vmem:[%s2] sm:$0xf]
    %v561 = vld [vmem:[%s2 + $0x4] sm:$0xf]
    %v562 = vld [vmem:[%s2 + $0x8] sm:$0xf]
    %v563 = vld [vmem:[%s2 + $0xc] sm:$0xf]
    %v564 = vld [vmem:[%s2 + $0x10] sm:$0xf]
    %v565 = vld [vmem:[%s2 + $0x14] sm:$0xf]
    %v566 = vld [vmem:[%s2 + $0x18] sm:$0xf]
    %v567 = vld [vmem:[%s2 + $0x1c] sm:$0xf]
    %v568 = vld [vmem:[%s2 + $0x20] sm:$0xf]
    %v569 = vld [vmem:[%s2 + $0x24] sm:$0xf]
    %v570 = vld [vmem:[%s2 + $0x28] sm:$0xf]
    %v571 = vld [vmem:[%s2 + $0x2c] sm:$0xf]
    %v572 = vld [vmem:[%s2 + $0x30] sm:$0xf]
    %v573 = vld [vmem:[%s2 + $0x34] sm:$0xf]
    %v574 = vld [vmem:[%s2 + $0x38] sm:$0xf]
    %v575 = vld [vmem:[%s2 + $0x3c] sm:$0xf]
    %v576 = vld [vmem:[%s2 + $0x40] sm:$0xf]
    %v577 = vld [vmem:[%s2 + $0x44] sm:$0xf]
    %v578 = vld [vmem:[%s2 + $0x48] sm:$0xf]
    %v579 = vld [vmem:[%s2 + $0x4c] sm:$0xf]
    %v580 = vld [vmem:[%s2 + $0x50] sm:$0xf]
    %v581 = vld [vmem:[%s2 + $0x54] sm:$0xf]
    %v582 = vld [vmem:[%s2 + $0x58] sm:$0xf]
    %v583 = vld [vmem:[%s2 + $0x5c] sm:$0xf]
    %v584 = vunpack.c.l.bf16 %v560
    %v585 = vunpack.c.l.bf16 %v561
    %v586 = vunpack.c.l.bf16 %v562
    %v587 = vunpack.c.l.bf16 %v563
    %v588 = vunpack.c.l.bf16 %v564
    %v589 = vunpack.c.l.bf16 %v565
    %v590 = vunpack.c.l.bf16 %v566
    %v591 = vunpack.c.l.bf16 %v567
    %v592 = vunpack.c.l.bf16 %v568
    %v593 = vunpack.c.l.bf16 %v569
    %v594 = vunpack.c.l.bf16 %v570
    %v595 = vunpack.c.l.bf16 %v571
    %v596 = vunpack.c.l.bf16 %v572
    %v597 = vunpack.c.l.bf16 %v573
    %v598 = vunpack.c.l.bf16 %v574
    %v599 = vunpack.c.l.bf16 %v575
    %v600 = vunpack.c.l.bf16 %v576
    %v601 = vunpack.c.l.bf16 %v577
    %v602 = vunpack.c.l.bf16 %v578
    %v603 = vunpack.c.l.bf16 %v579
    %v604 = vunpack.c.l.bf16 %v580
    %v605 = vunpack.c.l.bf16 %v581
    %v606 = vunpack.c.l.bf16 %v582
    %v607 = vunpack.c.l.bf16 %v583
    %v608 = vld [vmem:[%s3] sm:$0xff]
    %v609 = vlaneseq
    %v610 = vand.u32 %v609, 127
    %611 = vset.pattern.permute.xlu0 0
    %612 = vperm.xlu0 %611, %v608
    %v613 = vpop.permute.xlu0 %612
    %vm614 = vcmp.lt.s32.totalorder %v610, %v613
    %v615 = vsel %vm614, 1, 0
    %v616 = vcvt.s32.f32 %v615
    %v617 = vlaneseq
    %v618 = vshrl.u32 %v617, 7
    %v619 = vsub.s32 0, %v618
    %v620 = vrot.slane %v616, %v619
    %622 = vbcast.lane.b32.xlu0 %v620, 256
    %v623 = vpop.permute.xlu0 %622
    %s625 = sor.u32 256, 8
    %626 = vbcast.lane.b32.xlu0 %v620, %s625
    %v627 = vpop.permute.xlu0 %626
    %s629 = sor.u32 256, 16
    %630 = vbcast.lane.b32.xlu0 %v620, %s629
    %v631 = vpop.permute.xlu0 %630
    %v632 = vlaneseq
    %v633 = vshrl.u32 %v632, 7
    %v634 = vsub.s32 1, %v633
    %v635 = vrot.slane %v616, %v634
    %637 = vbcast.lane.b32.xlu0 %v635, 256
    %v638 = vpop.permute.xlu0 %637
    %s640 = sor.u32 256, 8
    %641 = vbcast.lane.b32.xlu0 %v635, %s640
    %v642 = vpop.permute.xlu0 %641
    %s644 = sor.u32 256, 16
    %645 = vbcast.lane.b32.xlu0 %v635, %s644
    %v646 = vpop.permute.xlu0 %645
    %v647 = vlaneseq
    %v648 = vshrl.u32 %v647, 7
    %v649 = vsub.s32 2, %v648
    %v650 = vrot.slane %v616, %v649
    %652 = vbcast.lane.b32.xlu0 %v650, 256
    %v653 = vpop.permute.xlu0 %652
    %s655 = sor.u32 256, 8
    %656 = vbcast.lane.b32.xlu0 %v650, %s655
    %v657 = vpop.permute.xlu0 %656
    %s659 = sor.u32 256, 16
    %660 = vbcast.lane.b32.xlu0 %v650, %s659
    %v661 = vpop.permute.xlu0 %660
    %v662 = vlaneseq
    %v663 = vshrl.u32 %v662, 7
    %v664 = vsub.s32 3, %v663
    %v665 = vrot.slane %v616, %v664
    %667 = vbcast.lane.b32.xlu0 %v665, 256
    %v668 = vpop.permute.xlu0 %667
    %s670 = sor.u32 256, 8
    %671 = vbcast.lane.b32.xlu0 %v665, %s670
    %v672 = vpop.permute.xlu0 %671
    %s674 = sor.u32 256, 16
    %675 = vbcast.lane.b32.xlu0 %v665, %s674
    %v676 = vpop.permute.xlu0 %675
    %v677 = vlaneseq
    %v678 = vshrl.u32 %v677, 7
    %v679 = vsub.s32 4, %v678
    %v680 = vrot.slane %v616, %v679
    %682 = vbcast.lane.b32.xlu0 %v680, 256
    %v683 = vpop.permute.xlu0 %682
    %s685 = sor.u32 256, 8
    %686 = vbcast.lane.b32.xlu0 %v680, %s685
    %v687 = vpop.permute.xlu0 %686
    %s689 = sor.u32 256, 16
    %690 = vbcast.lane.b32.xlu0 %v680, %s689
    %v691 = vpop.permute.xlu0 %690
    %v692 = vlaneseq
    %v693 = vshrl.u32 %v692, 7
    %v694 = vsub.s32 5, %v693
    %v695 = vrot.slane %v616, %v694
    %697 = vbcast.lane.b32.xlu0 %v695, 256
    %v698 = vpop.permute.xlu0 %697
    %s700 = sor.u32 256, 8
    %701 = vbcast.lane.b32.xlu0 %v695, %s700
    %v702 = vpop.permute.xlu0 %701
    %s704 = sor.u32 256, 16
    %705 = vbcast.lane.b32.xlu0 %v695, %s704
    %v706 = vpop.permute.xlu0 %705
    %v707 = vlaneseq
    %v708 = vshrl.u32 %v707, 7
    %v709 = vsub.s32 6, %v708
    %v710 = vrot.slane %v616, %v709
    %712 = vbcast.lane.b32.xlu0 %v710, 256
    %v713 = vpop.permute.xlu0 %712
    %s715 = sor.u32 256, 8
    %716 = vbcast.lane.b32.xlu0 %v710, %s715
    %v717 = vpop.permute.xlu0 %716
    %s719 = sor.u32 256, 16
    %720 = vbcast.lane.b32.xlu0 %v710, %s719
    %v721 = vpop.permute.xlu0 %720
    %v722 = vlaneseq
    %v723 = vshrl.u32 %v722, 7
    %v724 = vsub.s32 7, %v723
    %v725 = vrot.slane %v616, %v724
    %727 = vbcast.lane.b32.xlu0 %v725, 256
    %v728 = vpop.permute.xlu0 %727
    %s730 = sor.u32 256, 8
    %731 = vbcast.lane.b32.xlu0 %v725, %s730
    %v732 = vpop.permute.xlu0 %731
    %s734 = sor.u32 256, 16
    %735 = vbcast.lane.b32.xlu0 %v725, %s734
    %v736 = vpop.permute.xlu0 %735
    %v737 = vmul.f32 %v584, %v623
    %v738 = vmul.f32 %v585, %v627
    %v739 = vmul.f32 %v586, %v631
    %v740 = vmul.f32 %v587, %v638
    %v741 = vmul.f32 %v588, %v642
    %v742 = vmul.f32 %v589, %v646
    %v743 = vmul.f32 %v590, %v653
    %v744 = vmul.f32 %v591, %v657
    %v745 = vmul.f32 %v592, %v661
    %v746 = vmul.f32 %v593, %v668
    %v747 = vmul.f32 %v594, %v672
    %v748 = vmul.f32 %v595, %v676
    %v749 = vmul.f32 %v596, %v683
    %v750 = vmul.f32 %v597, %v687
    %v751 = vmul.f32 %v598, %v691
    %v752 = vmul.f32 %v599, %v698
    %v753 = vmul.f32 %v600, %v702
    %v754 = vmul.f32 %v601, %v706
    %v755 = vmul.f32 %v602, %v713
    %v756 = vmul.f32 %v603, %v717
    %v757 = vmul.f32 %v604, %v721
    %v758 = vmul.f32 %v605, %v728
    %v759 = vmul.f32 %v606, %v732
    %v760 = vmul.f32 %v607, %v736
    %vm761 = vcmask 130048
    %v762 = vsel %vm761, %v737, 0.0
    %v763 = vsel %vm761, %v738, 0.0
    %v764 = vadd.f32 %v762, %v763
    %v765 = vsel %vm761, %v739, 0.0
    %v766 = vadd.f32 %v764, %v765
    %v767 = vrot.slane %v766, 4
    %v768 = vadd.f32 %v766, %v767
    %v769 = vrot.slane %v768, 2
    %v770 = vadd.f32 %v768, %v769
    %v771 = vrot.slane %v770, 1
    %v772 = vadd.f32 %v770, %v771
    %v773 = vsel %vm761, %v740, 0.0
    %v774 = vsel %vm761, %v741, 0.0
    %v775 = vadd.f32 %v773, %v774
    %v776 = vsel %vm761, %v742, 0.0
    %v777 = vadd.f32 %v775, %v776
    %v778 = vrot.slane %v777, 4
    %v779 = vadd.f32 %v777, %v778
    %v780 = vrot.slane %v779, 2
    %v781 = vadd.f32 %v779, %v780
    %v782 = vrot.slane %v781, 1
    %v783 = vadd.f32 %v781, %v782
    %v784 = vsel %vm761, %v743, 0.0
    %v785 = vsel %vm761, %v744, 0.0
    %v786 = vadd.f32 %v784, %v785
    %v787 = vsel %vm761, %v745, 0.0
    %v788 = vadd.f32 %v786, %v787
    %v789 = vrot.slane %v788, 4
    %v790 = vadd.f32 %v788, %v789
    %v791 = vrot.slane %v790, 2
    %v792 = vadd.f32 %v790, %v791
    %v793 = vrot.slane %v792, 1
    %v794 = vadd.f32 %v792, %v793
    %v795 = vsel %vm761, %v746, 0.0
    %v796 = vsel %vm761, %v747, 0.0
    %v797 = vadd.f32 %v795, %v796
    %v798 = vsel %vm761, %v748, 0.0
    %v799 = vadd.f32 %v797, %v798
    %v800 = vrot.slane %v799, 4
    %v801 = vadd.f32 %v799, %v800
    %v802 = vrot.slane %v801, 2
    %v803 = vadd.f32 %v801, %v802
    %v804 = vrot.slane %v803, 1
    %v805 = vadd.f32 %v803, %v804
    %v806 = vsel %vm761, %v749, 0.0
    %v807 = vsel %vm761, %v750, 0.0
    %v808 = vadd.f32 %v806, %v807
    %v809 = vsel %vm761, %v751, 0.0
    %v810 = vadd.f32 %v808, %v809
    %v811 = vrot.slane %v810, 4
    %v812 = vadd.f32 %v810, %v811
    %v813 = vrot.slane %v812, 2
    %v814 = vadd.f32 %v812, %v813
    %v815 = vrot.slane %v814, 1
    %v816 = vadd.f32 %v814, %v815
    %v817 = vsel %vm761, %v752, 0.0
    %v818 = vsel %vm761, %v753, 0.0
    %v819 = vadd.f32 %v817, %v818
    %v820 = vsel %vm761, %v754, 0.0
    %v821 = vadd.f32 %v819, %v820
    %v822 = vrot.slane %v821, 4
    %v823 = vadd.f32 %v821, %v822
    %v824 = vrot.slane %v823, 2
    %v825 = vadd.f32 %v823, %v824
    %v826 = vrot.slane %v825, 1
    %v827 = vadd.f32 %v825, %v826
    %v828 = vsel %vm761, %v755, 0.0
    %v829 = vsel %vm761, %v756, 0.0
    %v830 = vadd.f32 %v828, %v829
    %v831 = vsel %vm761, %v757, 0.0
    %v832 = vadd.f32 %v830, %v831
    %v833 = vrot.slane %v832, 4
    %v834 = vadd.f32 %v832, %v833
    %v835 = vrot.slane %v834, 2
    %v836 = vadd.f32 %v834, %v835
    %v837 = vrot.slane %v836, 1
    %v838 = vadd.f32 %v836, %v837
    %v839 = vsel %vm761, %v758, 0.0
    %v840 = vsel %vm761, %v759, 0.0
    %v841 = vadd.f32 %v839, %v840
    %v842 = vsel %vm761, %v760, 0.0
    %v843 = vadd.f32 %v841, %v842
    %v844 = vrot.slane %v843, 4
    %v845 = vadd.f32 %v843, %v844
    %v846 = vrot.slane %v845, 2
    %v847 = vadd.f32 %v845, %v846
    %v848 = vrot.slane %v847, 1
    %v849 = vadd.f32 %v847, %v848
    %v850 = vld [vmem:[%s4] sm:$0xff]
    %852 = vset.pattern.permute.xlu0 0
    %853 = vperm.xlu0 %852, %v850
    %v854 = vpop.permute.xlu0 %853
    %v855 = vrot.slane %v854, 1
    %v856 = vrot.slane %v854, 2
    %v857 = vrot.slane %v854, 3
    %v858 = vrot.slane %v854, 4
    %v859 = vrot.slane %v854, 5
    %v860 = vrot.slane %v854, 6
    %v861 = vrot.slane %v854, 7
    %v870 = vmul.f32 %v772, %v854
    %v871 = vmul.f32 %v783, %v855
    %v872 = vmul.f32 %v794, %v856
    %v873 = vmul.f32 %v805, %v857
    %v874 = vmul.f32 %v816, %v858
    %v875 = vmul.f32 %v827, %v859
    %v876 = vmul.f32 %v838, %v860
    %v877 = vmul.f32 %v849, %v861
    %v878 = vld [vmem:[%s9] sm:$0xf]
    %v879 = vld [vmem:[%s9 + $0x4] sm:$0xf]
    %v880 = vpack.c.bf16 %v870, %v870
    %v881 = vpack.c.bf16 %v871, %v871
    %v882 = vpack.c.bf16 %v872, %v872
    %v883 = vpack.c.bf16 %v873, %v873
    %v884 = vpack.c.bf16 %v874, %v874
    %v885 = vpack.c.bf16 %v875, %v875
    %v886 = vpack.c.bf16 %v876, %v876
    %v887 = vpack.c.bf16 %v877, %v877
    %v888 = vld [vmem:[%s10] sm:$0x1]
    %v890 = vlaneseq
    %v891 = vshrl.u32 %v890, 7
    %v892 = vsub.s32 0, %v891
    %v893 = vrot.slane %v888, %v892
    %v903 = vunpack.c.l.b16 %v880
    %v904 = vunpack.c.l.b16 %v881
    %v905 = vunpack.c.l.b16 %v882
    %v906 = vunpack.c.l.b16 %v883
    %v907 = vunpack.c.l.b16 %v884
    %v908 = vunpack.c.l.b16 %v885
    %v909 = vunpack.c.l.b16 %v886
    %v910 = vunpack.c.l.b16 %v887
    %v911 = vrot.slane %v904, 7
    %vm912 = vcmask 1041409
    %v913 = vsel %vm912, %v911, %v903
    %v914 = vrot.slane %v905, 6
    %vm915 = vcmask 1042434
    %v916 = vsel %vm915, %v914, %v913
    %v917 = vrot.slane %v906, 5
    %vm918 = vcmask 1043459
    %v919 = vsel %vm918, %v917, %v916
    %v920 = vrot.slane %v907, 4
    %vm921 = vcmask 1044484
    %v922 = vsel %vm921, %v920, %v919
    %v923 = vrot.slane %v908, 3
    %vm924 = vcmask 1045509
    %v925 = vsel %vm924, %v923, %v922
    %v926 = vrot.slane %v909, 2
    %vm927 = vcmask 1046534
    %v928 = vsel %vm927, %v926, %v925
    %v929 = vrot.slane %v910, 1
    %vm930 = vcmask 1047559
    %v931 = vsel %vm930, %v929, %v928
    %v932 = vpack.c.b16 %v931, %v931
    %v935 = vunpack.c.l.b16 %v878
    %v936 = vunpack.c.l.b16 %v879
    %v937 = vpack.c.b16 %v936, %v935
    %v940 = vsel %vm761, %v932, 0
    %942 = vmatprep.subr.bf16.mxu0 0
    %943 = vmatpush1.bf16.msra.mxu0 %v937
    %944 = vmatprep.subr.bf16.mxu0 0
    %945 = vmatpush1.bf16.msra.mxu0 0
    %946 = vmatprep.subr.bf16.mxu0 0
    %947 = vmatpush1.bf16.msra.mxu0 0
    %948 = vmatprep.subr.bf16.mxu0 0
    %949 = vmatpush1.bf16.msra.mxu0 0
    %950 = vmatprep.subr.bf16.mxu0 0
    %951 = vmatpush1.bf16.msra.mxu0 0
    %952 = vmatprep.subr.bf16.mxu0 0
    %953 = vmatpush1.bf16.msra.mxu0 0
    %954 = vmatprep.subr.bf16.mxu0 0
    %955 = vmatpush1.bf16.msra.mxu0 0
    %956 = vmatprep.subr.bf16.mxu0 0
    %957 = vmatpush1.bf16.msra.mxu0 0
    %958 = vmatprep.subr.bf16.mxu0 0
    %959 = vmatpush1.bf16.msra.mxu0 0
    %960 = vmatprep.subr.bf16.mxu0 0
    %961 = vmatpush1.bf16.msra.mxu0 0
    %962 = vmatprep.subr.bf16.mxu0 0
    %963 = vmatpush1.bf16.msra.mxu0 0
    %964 = vmatprep.subr.bf16.mxu0 0
    %965 = vmatpush1.bf16.msra.mxu0 0
    %966 = vmatprep.subr.bf16.mxu0 0
    %967 = vmatpush1.bf16.msra.mxu0 0
    %968 = vmatprep.subr.bf16.mxu0 0
    %969 = vmatpush1.bf16.msra.mxu0 0
    %970 = vmatprep.subr.bf16.mxu0 0
    %971 = vmatpush1.bf16.msra.mxu0 0
    %972 = vmatprep.subr.bf16.mxu0 0
    %973 = vmatpush1.bf16.msra.mxu0 0
    %974 = vmatprep.mubr.bf16.mxu0 0
    %975 = vmatmul.mubr.bf16.gmra.mrb[0].mxu0 %v940
    %v976 = vpop.f32.mrb[0].mxu0
    %v977 = vadd.f32 %v893, %v976
    %v978 = vpop.f32.mrb[0].mxu0
    %v979 = vpop.f32.mrb[0].mxu0
    %v980 = vpop.f32.mrb[0].mxu0
    %981 = vdwg.mxu0
    %v982 = vtanh.pop %v977
    %v991 = vsel %vm912, %v273, %v272
    %v992 = vsel %vm915, %v274, %v991
    %v993 = vsel %vm918, %v275, %v992
    %v994 = vsel %vm921, %v276, %v993
    %v995 = vsel %vm924, %v277, %v994
    %v996 = vsel %vm927, %v278, %v995
    %v997 = vsel %vm930, %v279, %v996
    %v1007 = vsel %vm912, %v553, %v552
    %v1008 = vsel %vm915, %v554, %v1007
    %v1009 = vsel %vm918, %v555, %v1008
    %v1010 = vsel %vm921, %v556, %v1009
    %v1011 = vsel %vm924, %v557, %v1010
    %v1012 = vsel %vm927, %v558, %v1011
    %v1013 = vsel %vm930, %v559, %v1012
    %v1015 = vld [vmem:[%s11] sm:$0xf]
    %v1016 = vld [vmem:[%s11 + $0x4] sm:$0xf]
    %v1017 = vld [vmem:[%s11 + $0x8] sm:$0xf]
    %v1018 = vld [vmem:[%s11 + $0xc] sm:$0xf]
    %v1019 = vld [vmem:[%s11 + $0x10] sm:$0xf]
    %v1020 = vld [vmem:[%s11 + $0x14] sm:$0xf]
    %v1021 = vld [vmem:[%s11 + $0x18] sm:$0xf]
    %v1022 = vld [vmem:[%s11 + $0x1c] sm:$0xf]
    %v1023 = vld [vmem:[%s11 + $0x20] sm:$0xf]
    %v1024 = vld [vmem:[%s11 + $0x24] sm:$0xf]
    %v1025 = vld [vmem:[%s11 + $0x28] sm:$0xf]
    %v1026 = vld [vmem:[%s11 + $0x2c] sm:$0xf]
    %v1027 = vld [vmem:[%s11 + $0x30] sm:$0xf]
    %v1028 = vld [vmem:[%s11 + $0x34] sm:$0xf]
    %v1029 = vld [vmem:[%s11 + $0x38] sm:$0xf]
    %v1030 = vld [vmem:[%s11 + $0x3c] sm:$0xf]
    %v1031 = vld [vmem:[%s11 + $0x40] sm:$0xf]
    %v1032 = vld [vmem:[%s11 + $0x44] sm:$0xf]
    %v1033 = vld [vmem:[%s11 + $0x48] sm:$0xf]
    %v1034 = vld [vmem:[%s11 + $0x4c] sm:$0xf]
    %v1035 = vld [vmem:[%s11 + $0x50] sm:$0xf]
    %v1036 = vld [vmem:[%s11 + $0x54] sm:$0xf]
    %v1037 = vld [vmem:[%s11 + $0x58] sm:$0xf]
    %v1038 = vld [vmem:[%s11 + $0x5c] sm:$0xf]
    %v1039 = vld [vmem:[%s11 + $0x60] sm:$0xf]
    %v1040 = vld [vmem:[%s11 + $0x64] sm:$0xf]
    %v1041 = vld [vmem:[%s11 + $0x68] sm:$0xf]
    %v1042 = vld [vmem:[%s11 + $0x6c] sm:$0xf]
    %v1043 = vld [vmem:[%s11 + $0x70] sm:$0xf]
    %v1044 = vld [vmem:[%s11 + $0x74] sm:$0xf]
    %v1045 = vld [vmem:[%s11 + $0x78] sm:$0xf]
    %v1046 = vld [vmem:[%s11 + $0x7c] sm:$0xf]
    %v1047 = vld [vmem:[%s11 + $0x80] sm:$0xf]
    %v1048 = vld [vmem:[%s11 + $0x84] sm:$0xf]
    %v1049 = vld [vmem:[%s11 + $0x88] sm:$0xf]
    %v1050 = vld [vmem:[%s11 + $0x8c] sm:$0xf]
    %v1051 = vld [vmem:[%s11 + $0x90] sm:$0xf]
    %v1052 = vld [vmem:[%s11 + $0x94] sm:$0xf]
    %v1053 = vld [vmem:[%s11 + $0x98] sm:$0xf]
    %v1054 = vld [vmem:[%s11 + $0x9c] sm:$0xf]
    %v1055 = vld [vmem:[%s11 + $0xa0] sm:$0xf]
    %v1056 = vld [vmem:[%s11 + $0xa4] sm:$0xf]
    %v1057 = vld [vmem:[%s11 + $0xa8] sm:$0xf]
    %v1058 = vld [vmem:[%s11 + $0xac] sm:$0xf]
    %v1059 = vld [vmem:[%s11 + $0xb0] sm:$0xf]
    %v1060 = vld [vmem:[%s11 + $0xb4] sm:$0xf]
    %v1061 = vld [vmem:[%s11 + $0xb8] sm:$0xf]
    %v1062 = vld [vmem:[%s11 + $0xbc] sm:$0xf]
    %v1063 = vpack.c.bf16 %v997, %v997
    %v1064 = vpack.c.bf16 %v1013, %v1013
    %v1065 = vpack.c.bf16 %v982, %v982
    %v1066 = vld [vmem:[%s12] sm:$0x1]
    %v1068 = vlaneseq
    %v1069 = vshrl.u32 %v1068, 7
    %v1070 = vsub.s32 0, %v1069
    %v1071 = vrot.slane %v1066, %v1070
    %v1121 = vunpack.c.l.b16 %v1015
    %v1122 = vunpack.c.l.b16 %v1016
    %v1123 = vunpack.c.l.b16 %v1017
    %v1124 = vunpack.c.l.b16 %v1018
    %v1125 = vunpack.c.l.b16 %v1019
    %v1126 = vunpack.c.l.b16 %v1020
    %v1127 = vunpack.c.l.b16 %v1021
    %v1128 = vunpack.c.l.b16 %v1022
    %v1129 = vunpack.c.l.b16 %v1023
    %v1130 = vunpack.c.l.b16 %v1024
    %v1131 = vunpack.c.l.b16 %v1025
    %v1132 = vunpack.c.l.b16 %v1026
    %v1133 = vunpack.c.l.b16 %v1027
    %v1134 = vunpack.c.l.b16 %v1028
    %v1135 = vunpack.c.l.b16 %v1029
    %v1136 = vunpack.c.l.b16 %v1030
    %v1137 = vunpack.c.l.b16 %v1031
    %v1138 = vunpack.c.l.b16 %v1032
    %v1139 = vunpack.c.l.b16 %v1033
    %v1140 = vunpack.c.l.b16 %v1034
    %v1141 = vunpack.c.l.b16 %v1035
    %v1142 = vunpack.c.l.b16 %v1036
    %v1143 = vunpack.c.l.b16 %v1037
    %v1144 = vunpack.c.l.b16 %v1038
    %v1145 = vunpack.c.l.b16 %v1039
    %v1146 = vunpack.c.l.b16 %v1040
    %v1147 = vunpack.c.l.b16 %v1041
    %v1148 = vunpack.c.l.b16 %v1042
    %v1149 = vunpack.c.l.b16 %v1043
    %v1150 = vunpack.c.l.b16 %v1044
    %v1151 = vunpack.c.l.b16 %v1045
    %v1152 = vunpack.c.l.b16 %v1046
    %v1153 = vunpack.c.l.b16 %v1047
    %v1154 = vunpack.c.l.b16 %v1048
    %v1155 = vunpack.c.l.b16 %v1049
    %v1156 = vunpack.c.l.b16 %v1050
    %v1157 = vunpack.c.l.b16 %v1051
    %v1158 = vunpack.c.l.b16 %v1052
    %v1159 = vunpack.c.l.b16 %v1053
    %v1160 = vunpack.c.l.b16 %v1054
    %v1161 = vunpack.c.l.b16 %v1055
    %v1162 = vunpack.c.l.b16 %v1056
    %v1163 = vunpack.c.l.b16 %v1057
    %v1164 = vunpack.c.l.b16 %v1058
    %v1165 = vunpack.c.l.b16 %v1059
    %v1166 = vunpack.c.l.b16 %v1060
    %v1167 = vunpack.c.l.b16 %v1061
    %v1168 = vunpack.c.l.b16 %v1062
    %v1169 = vpack.c.b16 %v1122, %v1121
    %v1170 = vpack.c.b16 %v1124, %v1123
    %v1171 = vpack.c.b16 %v1126, %v1125
    %v1172 = vpack.c.b16 %v1128, %v1127
    %v1173 = vpack.c.b16 %v1130, %v1129
    %v1174 = vpack.c.b16 %v1132, %v1131
    %v1175 = vpack.c.b16 %v1134, %v1133
    %v1176 = vpack.c.b16 %v1136, %v1135
    %v1177 = vpack.c.b16 %v1138, %v1137
    %v1178 = vpack.c.b16 %v1140, %v1139
    %v1179 = vpack.c.b16 %v1142, %v1141
    %v1180 = vpack.c.b16 %v1144, %v1143
    %v1181 = vpack.c.b16 %v1146, %v1145
    %v1182 = vpack.c.b16 %v1148, %v1147
    %v1183 = vpack.c.b16 %v1150, %v1149
    %v1184 = vpack.c.b16 %v1152, %v1151
    %v1185 = vpack.c.b16 %v1154, %v1153
    %v1186 = vpack.c.b16 %v1156, %v1155
    %v1187 = vpack.c.b16 %v1158, %v1157
    %v1188 = vpack.c.b16 %v1160, %v1159
    %v1189 = vpack.c.b16 %v1162, %v1161
    %v1190 = vpack.c.b16 %v1164, %v1163
    %v1191 = vpack.c.b16 %v1166, %v1165
    %v1192 = vpack.c.b16 %v1168, %v1167
    %1217 = vmatprep.subr.bf16.mxu0 0
    %1218 = vmatpush1.bf16.msra.mxu0 %v1169
    %1219 = vmatprep.subr.bf16.mxu0 0
    %1220 = vmatpush1.bf16.msra.mxu0 %v1170
    %1221 = vmatprep.subr.bf16.mxu0 0
    %1222 = vmatpush1.bf16.msra.mxu0 %v1171
    %1223 = vmatprep.subr.bf16.mxu0 0
    %1224 = vmatpush1.bf16.msra.mxu0 %v1172
    %1225 = vmatprep.subr.bf16.mxu0 0
    %1226 = vmatpush1.bf16.msra.mxu0 %v1173
    %1227 = vmatprep.subr.bf16.mxu0 0
    %1228 = vmatpush1.bf16.msra.mxu0 %v1174
    %1229 = vmatprep.subr.bf16.mxu0 0
    %1230 = vmatpush1.bf16.msra.mxu0 %v1175
    %1231 = vmatprep.subr.bf16.mxu0 0
    %1232 = vmatpush1.bf16.msra.mxu0 %v1176
    %1233 = vmatprep.subr.bf16.mxu0 0
    %1234 = vmatpush1.bf16.msra.mxu0 %v1177
    %1235 = vmatprep.subr.bf16.mxu0 0
    %1236 = vmatpush1.bf16.msra.mxu0 %v1178
    %1237 = vmatprep.subr.bf16.mxu0 0
    %1238 = vmatpush1.bf16.msra.mxu0 %v1179
    %1239 = vmatprep.subr.bf16.mxu0 0
    %1240 = vmatpush1.bf16.msra.mxu0 %v1180
    %1241 = vmatprep.subr.bf16.mxu0 0
    %1242 = vmatpush1.bf16.msra.mxu0 %v1181
    %1243 = vmatprep.subr.bf16.mxu0 0
    %1244 = vmatpush1.bf16.msra.mxu0 %v1182
    %1245 = vmatprep.subr.bf16.mxu0 0
    %1246 = vmatpush1.bf16.msra.mxu0 %v1183
    %1247 = vmatprep.subr.bf16.mxu0 0
    %1248 = vmatpush1.bf16.msra.mxu0 %v1184
    %1249 = vmatprep.mubr.bf16.mxu0 %v1064
    %1250 = vmatmul.mubr.bf16.gmra.mrb[0].mxu0 %v1063
    %v1251 = vpop.f32.mrb[0].mxu0
    %v1252 = vadd.f32 %v1071, %v1251
    %v1253 = vpop.f32.mrb[0].mxu0
    %v1254 = vpop.f32.mrb[0].mxu0
    %v1255 = vpop.f32.mrb[0].mxu0
    %1256 = vdwg.mxu0
    %1257 = vmatprep.subr.bf16.mxu0 0
    %1258 = vmatpush1.bf16.msra.mxu0 %v1185
    %1259 = vmatprep.subr.bf16.mxu0 0
    %1260 = vmatpush1.bf16.msra.mxu0 %v1186
    %1261 = vmatprep.subr.bf16.mxu0 0
    %1262 = vmatpush1.bf16.msra.mxu0 %v1187
    %1263 = vmatprep.subr.bf16.mxu0 0
    %1264 = vmatpush1.bf16.msra.mxu0 %v1188
    %1265 = vmatprep.subr.bf16.mxu0 0
    %1266 = vmatpush1.bf16.msra.mxu0 %v1189
    %1267 = vmatprep.subr.bf16.mxu0 0
    %1268 = vmatpush1.bf16.msra.mxu0 %v1190
    %1269 = vmatprep.subr.bf16.mxu0 0
    %1270 = vmatpush1.bf16.msra.mxu0 %v1191
    %1271 = vmatprep.subr.bf16.mxu0 0
    %1272 = vmatpush1.bf16.msra.mxu0 %v1192
    %1273 = vmatprep.subr.bf16.mxu0 0
    %1274 = vmatpush1.bf16.msra.mxu0 0
    %1275 = vmatprep.subr.bf16.mxu0 0
    %1276 = vmatpush1.bf16.msra.mxu0 0
    %1277 = vmatprep.subr.bf16.mxu0 0
    %1278 = vmatpush1.bf16.msra.mxu0 0
    %1279 = vmatprep.subr.bf16.mxu0 0
    %1280 = vmatpush1.bf16.msra.mxu0 0
    %1281 = vmatprep.subr.bf16.mxu0 0
    %1282 = vmatpush1.bf16.msra.mxu0 0
    %1283 = vmatprep.subr.bf16.mxu0 0
    %1284 = vmatpush1.bf16.msra.mxu0 0
    %1285 = vmatprep.subr.bf16.mxu0 0
    %1286 = vmatpush1.bf16.msra.mxu0 0
    %1287 = vmatprep.subr.bf16.mxu0 0
    %1288 = vmatpush1.bf16.msra.mxu0 0
    %1289 = vmatprep.mubr.bf16.mxu0 0
    %1290 = vmatmul.mubr.bf16.gmra.mrb[0].mxu0 %v1065
    %v1291 = vpop.f32.mrb[0].mxu0
    %v1292 = vadd.f32 %v1252, %v1291
    %v1293 = vpop.f32.mrb[0].mxu0
    %v1294 = vpop.f32.mrb[0].mxu0
    %v1295 = vpop.f32.mrb[0].mxu0
    %1296 = vdwg.mxu0
    %v1297 = vmul.f32 %v1292, 0.33333334
    %1298 = vst [vmem:[#allocation8] sm:$0xff] %v1297
    // Predicated region
    $region66: #{tpu_custom_call.1} parent=1 // pred_check
      _
    $region67: #{tpu_custom_call.1} parent=1 // pred_check_branch
      %1300 = sbr.rel (0) target = $region69
    $region68: #{tpu_custom_call.1} parent=1 // pred_region
      %s1302 = ssub.s32 128, 128
      %1303 = vsyncadd [#allocation4], %s1302
      %s1305 = sshll.u32 [#allocation8], 4
      %s1306 = int_to_ptr.vmem [resolvable:$true] %s1305
      %1308 = dma.vmem_to_hbm [thread:$0]  %s1306, 128, %s13, [#allocation4]
    $region69: #{tpu_custom_call.1} parent=1 // pred_fallthru
      _
    // Predicated region
    $region70: #{tpu_custom_call.1} parent=1 // pred_check
      _
    $region71: #{tpu_custom_call.1} parent=1 // pred_check_branch
      %1310 = sbr.rel (0) target = $region73
    $region72: #{tpu_custom_call.1} parent=1 // pred_region
      %1311 = dma.done [#allocation4], 128
    $region73: #{tpu_custom_call.1} parent=1 // pred_fallthru
      _
    %1312 = vsyncpa [#allocation3], 1
    %1313 = vsyncpa [#allocation6], 1
    %1314 = vsyncpa [#allocation4], 1

</llo_original>
